<compile_context>
chip_gen: v7x
topology: tpu7x:2x2x1
jax: 0.10.0
libtpu: 0.0.40
codegen_flags: <defaults>
</compile_context>

<pallas_src>
import math
from functools import partial

import jax
import jax.numpy as jnp
from jax.experimental import pallas as pl
from jax.experimental.pallas import tpu as pltpu


def _extend_kernel(x_ref, o_ref, *, k, d_model, d_out):
    # x_ref : (row_tile, k*d_model)  VMEM tile (any float dtype)
    # o_ref : (row_tile, k*d_out)    VMEM tile (out dtype)
    extra = d_out - d_model
    rows_t = x_ref.shape[0]
    xt = x_ref[...].astype(o_ref.dtype)   # cast in-register; no extra HBM pass

    if extra == 0:
        o_ref[...] = xt
        return

    if k == 1:
        if d_model % 128 == 0:
            # Lane-aligned split: both stores are unmasked full-lane stores.
            o_ref[:, :d_model] = xt
            o_ref[:, d_model:] = jnp.zeros((rows_t, extra), dtype=o_ref.dtype)
        else:
            # Non-lane-aligned boundary: build the padded tile in-register and
            # issue a single lane-dense full-width store (VPU/XLU work is free
            # under the HBM bound).
            z = jnp.zeros((rows_t, extra), dtype=o_ref.dtype)
            o_ref[...] = jnp.concatenate([xt, z], axis=-1)
        return

    # Folded case (d_out not a multiple of 128): k logical rows share one physical
    # row; output lanes are k interleaved [copy(d_model) | zeros(extra)] groups.
    z = jnp.zeros((rows_t, extra), dtype=o_ref.dtype)
    pieces = []
    for g in range(k):  # static python unroll (k is small, <= 16)
        pieces.append(xt[:, g * d_model:(g + 1) * d_model])
        pieces.append(z)
    o_ref[...] = jnp.concatenate(pieces, axis=-1)


def _vmem_params():
    """Generation-aware (vmem_limit_bytes, tile budget)."""
    try:
        cap = int(pltpu.get_tpu_info().vmem_capacity_bytes)
    except Exception:
        cap = 64 * 1024 * 1024  # conservative fallback (v7x per-core VMEM)
    limit = min(cap // 2, 64 * 1024 * 1024)   # ~32 MiB on v7x, 64 MiB on v5e/v6e
    budget = (limit * 3) // 4                 # leave double-buffer headroom
    return limit, budget


def _fold_factor(rows: int, d_out: int, extra: int) -> int:
    """Smallest k with k*d_out % 128 == 0 (fold rows into lanes), if usable."""
    if extra <= 0 or d_out % 128 == 0:
        return 1
    k = 128 // math.gcd(d_out, 128)
    if 1 < k <= 16 and rows % k == 0:
        return k
    return 1


def _choose_row_tile(rows: int, d_in_w: int, d_out_w: int,
                     in_itemsize: int, out_itemsize: int,
                     align: int, vmem_budget_bytes: int) -> int:
    """Largest legal row tile whose double-buffered in+out tiles fit the budget,
    capped so the grid has >= 2 steps (both v7x TensorCores get work)."""
    if rows <= align:
        return rows  # block equals full dim -> always legal
    per_row = 2 * (d_in_w * in_itemsize + d_out_w * out_itemsize)  # double-buffered
    tt = max(align, min(rows, vmem_budget_bytes // max(per_row, 1)))
    tt = max(align, (tt // align) * align)  # packed-sublane aligned
    # Ensure >= 2 grid steps so the "parallel" row axis shards across v7x's 2 TCs.
    half = ((rows + 1) // 2 + align - 1) // align * align
    tt = min(tt, half)
    return min(tt, rows)


def embedding_extend(x: jax.Array, extra_space: int, out_dtype=None) -> jax.Array:
    """Pallas equivalent of EmbeddingExtend.forward.

    x: (*batch, tokens, d_model)
    returns: (*batch, tokens, d_model + extra_space)
             dtype = promote(x.dtype, float32) by default (torch.zeros is f32 and
             torch.cat promotes), overridable via out_dtype.
    """
    *batch_dims, tokens, d_model = x.shape
    d_out = d_model + extra_space
    if out_dtype is None:
        out_dtype = jnp.promote_types(x.dtype, jnp.float32)
    out_dtype = jnp.dtype(out_dtype)

    rows = int(math.prod(batch_dims)) * tokens

    # Fold rows into the lane axis when d_out is not 128-aligned (free contiguous
    # reshapes in the wrapper; restores lane-dense stores and full-width DMAs).
    k = _fold_factor(rows, d_out, extra_space)
    rows_f = rows // k
    din_f, dout_f = k * d_model, k * d_out

    x2d = x.reshape(rows_f, din_f)

    in_itemsize = jnp.dtype(x.dtype).itemsize
    out_itemsize = out_dtype.itemsize
    align = max(8, 32 // max(in_itemsize, 1))   # 8 for f32, 16 for bf16, 32 for int8/fp8

    vmem_limit, vmem_budget = _vmem_params()
    tt = _choose_row_tile(rows_f, din_f, dout_f, in_itemsize, out_itemsize,
                          align, vmem_budget)
    grid = (pl.cdiv(rows_f, tt),)

    bytes_accessed = rows * d_model * in_itemsize + rows * d_out * out_itemsize

    out2d = pl.pallas_call(
        partial(_extend_kernel, k=k, d_model=d_model, d_out=d_out),
        out_shape=jax.ShapeDtypeStruct((rows_f, dout_f), out_dtype),
        grid_spec=pltpu.PrefetchScalarGridSpec(
            num_scalar_prefetch=0,
            grid=grid,
            in_specs=[pl.BlockSpec((tt, din_f), lambda r: (r, 0))],
            out_specs=pl.BlockSpec((tt, dout_f), lambda r: (r, 0)),
        ),
        compiler_params=pltpu.CompilerParams(
            dimension_semantics=("parallel",),
            vmem_limit_bytes=vmem_limit,
        ),
        cost_estimate=pl.CostEstimate(
            flops=0, transcendentals=0, bytes_accessed=bytes_accessed),
    )(x2d)

    return out2d.reshape(*batch_dims, tokens, d_out)


if __name__ == "__main__":
    key = jax.random.PRNGKey(0)

    # Test 1: f32 input, small d_out (< 128) -> exercises the row->lane fold path.
    batch, tokens, d_model = 2, 8, 32
    extra_space = 16
    x = jax.random.normal(key, (batch, tokens, d_model), dtype=jnp.float32)
    out = jax.block_until_ready(embedding_extend(x, extra_space))
    ref = jnp.concatenate(
        [x, jnp.zeros((batch, tokens, extra_space), dtype=jnp.float32)], axis=-1)
    assert out.shape == (batch, tokens, d_model + extra_space), out.shape
    assert out.dtype == jnp.float32, out.dtype
    assert jnp.allclose(out, ref), "mismatch vs reference (f32, folded path)"

    # Test 2: bf16 input, rows not divisible by the fold factor -> exercises the
    # in-kernel cast, the unfolded single-full-width-store path and the partial tile.
    xb = jax.random.normal(key, (3, 5, d_model), dtype=jnp.bfloat16)
    outb = jax.block_until_ready(embedding_extend(xb, extra_space))
    refb = jnp.concatenate(
        [xb.astype(jnp.float32), jnp.zeros((3, 5, extra_space), dtype=jnp.float32)],
        axis=-1)
    assert outb.shape == (3, 5, d_model + extra_space), outb.shape
    assert outb.dtype == jnp.float32, outb.dtype
    assert jnp.allclose(outb, refb), "mismatch vs reference (bf16, unfolded path)"

    # Test 3: 128-aligned d_model/d_out -> exercises the two-unmasked-store path
    # and a multi-step ("parallel") grid.
    xc = jax.random.normal(key, (4, 16, 128), dtype=jnp.float32)
    outc = jax.block_until_ready(embedding_extend(xc, 128))
    refc = jnp.concatenate(
        [xc, jnp.zeros((4, 16, 128), dtype=jnp.float32)], axis=-1)
    assert outc.shape == (4, 16, 256), outc.shape
    assert jnp.allclose(outc, refc), "mismatch vs reference (aligned two-store path)"

    print("KERNEL_OK")
</pallas_src>

<mosaic_0001>
module attributes {stable_mosaic.version = 11 : i64} {
  func.func @_extend_kernel(%arg0: i32, %arg1: memref<2x256xf32, #tpu.memory_space<vmem>>, %arg2: memref<2x384xf32, #tpu.memory_space<vmem>>) attributes {dimension_semantics = [#tpu.dimension_semantics<parallel>], iteration_bounds = array<i64: 1>, scalar_prefetch = 0 : i64, scratch_operands = 0 : i64, tpu.core_type = #tpu.core_type<tc>, window_params = [{transform_indices = @transform_0, window_bounds = array<i64: 2, 256>}, {transform_indices = @transform_1, window_bounds = array<i64: 2, 384>}]} {
    %c0 = arith.constant 0 : index
    %c0_0 = arith.constant 0 : index
    %0 = vector.load %arg1[%c0, %c0_0] : memref<2x256xf32, #tpu.memory_space<vmem>>, vector<2x256xf32>
    %cst = arith.constant 0.000000e+00 : f32
    %1 = vector.broadcast %cst : f32 to vector<2x16xf32>
    %2 = vector.extract_strided_slice %0 {offsets = [0, 0], sizes = [2, 32], strides = [1, 1]} : vector<2x256xf32> to vector<2x32xf32>
    %3 = vector.extract_strided_slice %0 {offsets = [0, 32], sizes = [2, 32], strides = [1, 1]} : vector<2x256xf32> to vector<2x32xf32>
    %4 = vector.extract_strided_slice %0 {offsets = [0, 64], sizes = [2, 32], strides = [1, 1]} : vector<2x256xf32> to vector<2x32xf32>
    %5 = vector.extract_strided_slice %0 {offsets = [0, 96], sizes = [2, 32], strides = [1, 1]} : vector<2x256xf32> to vector<2x32xf32>
    %6 = vector.extract_strided_slice %0 {offsets = [0, 128], sizes = [2, 32], strides = [1, 1]} : vector<2x256xf32> to vector<2x32xf32>
    %7 = vector.extract_strided_slice %0 {offsets = [0, 160], sizes = [2, 32], strides = [1, 1]} : vector<2x256xf32> to vector<2x32xf32>
    %8 = vector.extract_strided_slice %0 {offsets = [0, 192], sizes = [2, 32], strides = [1, 1]} : vector<2x256xf32> to vector<2x32xf32>
    %9 = vector.extract_strided_slice %0 {offsets = [0, 224], sizes = [2, 32], strides = [1, 1]} : vector<2x256xf32> to vector<2x32xf32>
    %10 = tpu.concatenate %2, %1, %3, %1, %4, %1, %5, %1, %6, %1, %7, %1, %8, %1, %9, %1 in 1 : vector<2x32xf32>, vector<2x16xf32>, vector<2x32xf32>, vector<2x16xf32>, vector<2x32xf32>, vector<2x16xf32>, vector<2x32xf32>, vector<2x16xf32>, vector<2x32xf32>, vector<2x16xf32>, vector<2x32xf32>, vector<2x16xf32>, vector<2x32xf32>, vector<2x16xf32>, vector<2x32xf32>, vector<2x16xf32> -> vector<2x384xf32>
    %c0_1 = arith.constant 0 : index
    %c0_2 = arith.constant 0 : index
    %11 = vector.load %arg2[%c0_1, %c0_2] : memref<2x384xf32, #tpu.memory_space<vmem>>, vector<2x384xf32>
    tpu.vector_store %arg2[%c0_1, %c0_2], %10 {strides = array<i32>} : memref<2x384xf32, #tpu.memory_space<vmem>>, vector<2x384xf32>,
    return
  }
  func.func @transform_0(%arg0: i32) -> (i32, i32) {
    %c0_i32 = arith.constant 0 : i32
    %c0_i32_0 = arith.constant 0 : i32
    return %arg0, %c0_i32 : i32, i32
  }
  func.func @transform_1(%arg0: i32) -> (i32, i32) {
    %c0_i32 = arith.constant 0 : i32
    %c0_i32_0 = arith.constant 0 : i32
    return %arg0, %c0_i32 : i32, i32
  }
}

</mosaic_0001>

<llo_original>
// kernel: tpu_custom_call.1
$region0: #{tpu_custom_call.1}
  #allocation0 [shape = 'u32[]', space=smem, size = 0x4, offset = 0x4, fixed_abs, tag = 'smem constant byte address 0x4 - core index']
  #allocation1 [shape = 'u32[144,128]{1,0:T(1,128)}', space=vmem, size = 0x12000, scoped, tag = 'internal scratch']
  %s0 = inlined_call_operand.hbm [shape: f32[2,256], index: 0, kind: input, shape index: {}]
  %s1 = inlined_call_operand.hbm [shape: f32[2,384], index: 1, kind: output, shape index: {}]
  %s2 = sld [smem:[#allocation0]]
  $region18: #{tpu_custom_call.1} parent=0
    _
  %s4 = ssub.s32 1, %s2
  %s5 = scalar_select 0, %s4, %s2
  $region1: #{tpu_custom_call.1} parent=0
    #allocation2 [shape = 'u8[2048]{0}', space=vmem, size = 0x800, scoped, tag = 'input window, operand 0, single buffered']
    #allocation3 [shape = 's32[1]{0}', space=sflag, size = 0x4, scoped, tag = 'scoped memory for tpu_custom_call.1']
    #allocation4 [shape = 's32[1]{0}', space=sflag, size = 0x4, scoped, tag = 'scoped memory for tpu_custom_call.1']
    #allocation5 [shape = 'u8[3072]{0}', space=vmem, size = 0xc00, scoped, tag = 'output window, operand 0, single buffered']
    %6 = vsyncpa [#allocation3], 0
    %7 = vsyncpa [#allocation4], 0
    // Predicated region
    $region2: #{tpu_custom_call.1} parent=1 // pred_check
      _
    $region3: #{tpu_custom_call.1} parent=1 // pred_check_branch
      %9 = sbr.rel (0) target = $region5
    $region4: #{tpu_custom_call.1} parent=1 // pred_region
      %s11 = ssub.s32 64, 64
      %12 = vsyncadd [#allocation3], %s11
      %s14 = sshll.u32 [#allocation2], 4
      %s15 = int_to_ptr.vmem [resolvable:$true] %s14
      %17 = dma.hbm_to_vmem [thread:$0]  %s0, 64, %s15, [#allocation3]
    $region5: #{tpu_custom_call.1} parent=1 // pred_fallthru
      _
    // Predicated region
    $region6: #{tpu_custom_call.1} parent=1 // pred_check
      _
    $region7: #{tpu_custom_call.1} parent=1 // pred_check_branch
      %19 = sbr.rel (0) target = $region9
    $region8: #{tpu_custom_call.1} parent=1 // pred_region
      %20 = dma.done [#allocation3], 64
    $region9: #{tpu_custom_call.1} parent=1 // pred_fallthru
      _
    %v21 = vld [vmem:[#allocation2] sm:$0xf]
    %v24 = vunpack.c.l.s4 1983009808
    %v25 = vunpack.c.0.s8 %v24
    %v26 = vlaneseq
    %v27 = vshrl.u32 %v26, 7
    %v28 = vsub.s32 %v25, %v27
    %v29 = vrot.slane %v21, %v28
    %30 = vrot.lane.b32.xlu0 %v29, 16
    %v31 = vpop.permute.xlu0 %30
    %33 = vrot.lane.b32.xlu0 %v29, 32
    %v34 = vpop.permute.xlu0 %33
    %36 = vrot.lane.b32.xlu0 %v29, 48
    %v37 = vpop.permute.xlu0 %36
    %v39 = vcombine.high %v29, %v29
    %40 = vrot.lane.b32.xlu0 %v39, 64
    %v41 = vpop.permute.xlu0 %40
    %43 = vrot.lane.b32.xlu0 %v39, 80
    %v44 = vpop.permute.xlu0 %43
    %46 = vrot.lane.b32.xlu0 %v39, 96
    %v47 = vpop.permute.xlu0 %46
    %49 = vrot.lane.b32.xlu0 %v39, 112
    %v50 = vpop.permute.xlu0 %49
    %vm52 = vcmask 261120
    %v53 = vsel %vm52, %v21, 0.0
    %vm54 = vcmask 392192
    %v55 = vsel %vm54, %v53, %v31
    %vm56 = vcmask 654336
    %v57 = vsel %vm56, %v55, 0.0
    %vm58 = vcmask 785408
    %v59 = vsel %vm58, %v57, %v34
    %vm60 = vcmask 130048
    %v61 = vsel %vm60, 0.0, %v37
    %v62 = vsel %vm54, %v61, 0.0
    %vm63 = vcmask 523264
    %v64 = vsel %vm63, %v62, %v41
    %v65 = vsel %vm58, %v64, 0.0
    %vm66 = vcmask 916480
    %v67 = vsel %vm66, %v65, %v44
    %v68 = vsel %vm60, %v44, 0.0
    %v69 = vsel %vm52, %v68, %v47
    %v70 = vsel %vm63, %v69, 0.0
    %v71 = vsel %vm56, %v70, %v50
    %v72 = vsel %vm66, %v71, 0.0
    %v76 = vcombine.low %v59, %v67
    %v78 = vunpack.c.l.s4 1983009808
    %v79 = vunpack.c.0.s8 %v78
    %v80 = vlaneseq
    %v81 = vshrl.u32 %v80, 7
    %v82 = vsub.s32 %v79, %v81
    %v83 = vrot.slane %v76, %v82
    %v85 = vunpack.c.l.s4 1983009808
    %v86 = vunpack.c.0.s8 %v85
    %v87 = vlaneseq
    %v88 = vshrl.u32 %v87, 7
    %v89 = vsub.s32 %v86, %v88
    %v90 = vrot.slane %v72, %v89
    %v91 = vcombine.low %v83, %v90
    %93 = vst [vmem:[#allocation5] sm:$0x3f] %v91
    // Predicated region
    $region10: #{tpu_custom_call.1} parent=1 // pred_check
      _
    $region11: #{tpu_custom_call.1} parent=1 // pred_check_branch
      %95 = sbr.rel (0) target = $region13
    $region12: #{tpu_custom_call.1} parent=1 // pred_region
      %s97 = ssub.s32 96, 96
      %98 = vsyncadd [#allocation4], %s97
      %s100 = sshll.u32 [#allocation5], 4
      %s101 = int_to_ptr.vmem [resolvable:$true] %s100
      %103 = dma.vmem_to_hbm [thread:$0]  %s101, 96, %s1, [#allocation4]
    $region13: #{tpu_custom_call.1} parent=1 // pred_fallthru
      _
    // Predicated region
    $region14: #{tpu_custom_call.1} parent=1 // pred_check
      _
    $region15: #{tpu_custom_call.1} parent=1 // pred_check_branch
      %105 = sbr.rel (0) target = $region17
    $region16: #{tpu_custom_call.1} parent=1 // pred_region
      %106 = dma.done [#allocation4], 96
    $region17: #{tpu_custom_call.1} parent=1 // pred_fallthru
      _
    %107 = vsyncpa [#allocation3], 1
    %108 = vsyncpa [#allocation4], 1

</llo_original>
